<compile_context>
chip_gen: v6e
topology: v6e:2x2x1
jax: 0.10.0
libtpu: 0.0.40
codegen_flags: <defaults>
</compile_context>

<pallas_src>
import jax
import jax.numpy as jnp
from jax.experimental import pallas as pl
from jax.experimental.pallas import tpu as pltpu


def _regression_head_kernel(x_ref, w1_ref, b1_ref, w2_ref, b2_ref, o_ref):
    # fc1 on the MXU; accumulation is f32 regardless of the input dtype.
    h = jnp.dot(x_ref[...], w1_ref[...], preferred_element_type=jnp.float32)
    # bias + ReLU epilogue in f32 on the VPU (biases are kept f32).
    h = jnp.maximum(h + b1_ref[...], 0.0)
    # fc2: cast only the matmul *input* to the weight dtype (bf16 fast path);
    # the accumulator stays f32 via preferred_element_type.
    out = jnp.dot(h.astype(w2_ref.dtype), w2_ref[...],
                  preferred_element_type=jnp.float32)
    o_ref[...] = (out + b2_ref[...]).astype(o_ref.dtype)


def _choose_tm(bt, e, h, o, in_bytes, out_bytes, max_tm):
    """Largest row tile (multiple of 8) whose VMEM footprint fits a budget that
    is safe on v5e/v6e/v7x, capped so the grid has >= 2 steps when possible
    (keeps both v7x TensorCores busy)."""
    budget = 24 * 1024 * 1024
    # resident (single-buffered) weights + f32 biases
    resident = (e * h + h * o) * in_bytes + (h + o) * 4
    avail = max(budget - resident, 1 << 20)
    # per-row dynamic bytes: x tile (up to 3 buffers), f32 fc1 activation,
    # output tile (2 buffers)
    per_row = 3 * e * in_bytes + h * 4 + 2 * o * out_bytes
    tm = int(avail // per_row)
    tm = max(8, min(tm, max_tm))
    # never bigger than the (8-rounded) number of rows
    tm = min(tm, ((bt + 7) // 8) * 8)
    # keep at least two grid steps so "parallel" can shard across 2 TCs (v7x)
    if bt > 8:
        tm = min(tm, (((bt + 1) // 2 + 7) // 8) * 8)
    return max((tm // 8) * 8, 8)


def regression_head(x, w1, b1, w2, b2, *, use_bf16=True, max_tm=2048):
    """x: (batch, time, emb_dim) -> (batch, time, no_outputs)."""
    B, T, E = x.shape
    H = w1.shape[1]
    O = w2.shape[1]
    BT = B * T
    out_dtype = x.dtype

    if use_bf16:
        # Bandwidth-bound kernel: bf16 inputs halve the streamed bytes.
        # Accumulation / bias / ReLU remain f32 inside the kernel.
        x = x.astype(jnp.bfloat16)
        w1 = w1.astype(jnp.bfloat16)
        w2 = w2.astype(jnp.bfloat16)
    in_bytes = x.dtype.itemsize
    out_bytes = jnp.dtype(out_dtype).itemsize

    # No jnp.pad: the ragged last row tile is handled by Pallas (masked store).
    x2d = x.reshape(BT, E)
    b1r = b1.reshape(1, H).astype(jnp.float32)
    b2r = b2.reshape(1, O).astype(jnp.float32)

    tm = _choose_tm(BT, E, H, O, in_bytes, out_bytes, max_tm)
    n_steps = pl.cdiv(BT, tm)
    # Deeper x buffering only pays off when there are enough steps to hide DMA.
    x_buffers = 3 if n_steps >= 3 else 2

    flops = 2 * BT * (E * H + H * O)
    bytes_accessed = (BT * E * in_bytes + (E * H + H * O) * in_bytes
                      + (H + O) * 4 + BT * O * out_bytes)

    out2d = pl.pallas_call(
        _regression_head_kernel,
        out_shape=jax.ShapeDtypeStruct((BT, O), out_dtype),
        grid=(n_steps,),
        in_specs=[
            # streaming activations: one (tm, E) tile per grid step
            pl.BlockSpec((tm, E), lambda i: (i, 0),
                         pipeline_mode=pl.Buffered(x_buffers)),
            # weights / biases: constant index_map -> VMEM-resident; a single
            # buffer is enough (no re-DMA), halving their VMEM footprint.
            pl.BlockSpec((E, H), lambda i: (0, 0),
                         pipeline_mode=pl.Buffered(1)),
            pl.BlockSpec((1, H), lambda i: (0, 0),
                         pipeline_mode=pl.Buffered(1)),
            pl.BlockSpec((H, O), lambda i: (0, 0),
                         pipeline_mode=pl.Buffered(1)),
            pl.BlockSpec((1, O), lambda i: (0, 0),
                         pipeline_mode=pl.Buffered(1)),
        ],
        # Output is exactly (BT, O): no lane padding, no post-kernel slice.
        # TODO(synk): if O << 128 ever shows up as a vst.msk hotspot, sweep the
        # lane-padded-output variant against this one.
        out_specs=pl.BlockSpec((tm, O), lambda i: (i, 0)),
        compiler_params=pltpu.CompilerParams(
            dimension_semantics=("parallel",),
            vmem_limit_bytes=32 * 1024 * 1024,
        ),
        cost_estimate=pl.CostEstimate(flops=flops, transcendentals=0,
                                      bytes_accessed=bytes_accessed),
    )(x2d, w1, b1r, w2, b2r)

    return out2d.reshape(B, T, O)


def init_params(key, emb_dim, hidden_size, no_outputs, dtype=jnp.float32):
    """Deterministic init mimicking torch.nn.Linear (uniform +-1/sqrt(fan_in))."""
    k1, k2, k3, k4 = jax.random.split(key, 4)
    lim1 = 1.0 / jnp.sqrt(emb_dim)
    lim2 = 1.0 / jnp.sqrt(hidden_size)
    w1 = jax.random.uniform(k1, (emb_dim, hidden_size), dtype, -lim1, lim1)
    b1 = jax.random.uniform(k2, (hidden_size,), dtype, -lim1, lim1)
    w2 = jax.random.uniform(k3, (hidden_size, no_outputs), dtype, -lim2, lim2)
    b2 = jax.random.uniform(k4, (no_outputs,), dtype, -lim2, lim2)
    return w1, b1, w2, b2


if __name__ == "__main__":
    key = jax.random.PRNGKey(0)
    batch, seq, emb_dim, hidden, no_outputs = 2, 8, 32, 64, 4

    kx, kp = jax.random.split(key)
    x = jax.random.normal(kx, (batch, seq, emb_dim), jnp.float32)
    w1, b1, w2, b2 = init_params(kp, emb_dim, hidden, no_outputs)

    # Pure-JAX reference of the torch forward semantics.
    ref = jnp.maximum(x @ w1 + b1, 0.0) @ w2 + b2

    # Exact f32 path: must match the reference tightly.
    out_f32 = jax.block_until_ready(
        regression_head(x, w1, b1, w2, b2, use_bf16=False))
    # Default fast path: bf16 inputs, f32 accumulation.
    out_bf16 = jax.block_until_ready(regression_head(x, w1, b1, w2, b2))

    assert out_f32.shape == (batch, seq, no_outputs)
    assert out_bf16.shape == (batch, seq, no_outputs)
    assert jnp.allclose(out_f32, ref, atol=1e-5, rtol=1e-5)
    assert jnp.allclose(out_bf16, ref, atol=1e-1, rtol=1e-1)

    print("KERNEL_OK")
</pallas_src>

<mosaic_0001>
module attributes {stable_mosaic.version = 11 : i64} {
  func.func @_regression_head_kernel(%arg0: i32, %arg1: memref<8x32xf32, #tpu.memory_space<vmem>>, %arg2: memref<32x64xf32, #tpu.memory_space<vmem>>, %arg3: memref<1x64xf32, #tpu.memory_space<vmem>>, %arg4: memref<64x4xf32, #tpu.memory_space<vmem>>, %arg5: memref<1x4xf32, #tpu.memory_space<vmem>>, %arg6: memref<8x4xf32, #tpu.memory_space<vmem>>) attributes {dimension_semantics = [#tpu.dimension_semantics<parallel>], iteration_bounds = array<i64: 2>, scalar_prefetch = 0 : i64, scratch_operands = 0 : i64, tpu.core_type = #tpu.core_type<tc>, window_params = [{pipeline_mode = #tpu.pipeline_mode<double_buffered>, transform_indices = @transform_0, window_bounds = array<i64: 8, 32>}, {pipeline_mode = #tpu.pipeline_mode<synchronous>, transform_indices = @transform_1, window_bounds = array<i64: 32, 64>}, {pipeline_mode = #tpu.pipeline_mode<synchronous>, transform_indices = @transform_2, window_bounds = array<i64: 1, 64>}, {pipeline_mode = #tpu.pipeline_mode<synchronous>, transform_indices = @transform_3, window_bounds = array<i64: 64, 4>}, {pipeline_mode = #tpu.pipeline_mode<synchronous>, transform_indices = @transform_4, window_bounds = array<i64: 1, 4>}, {transform_indices = @transform_5, window_bounds = array<i64: 8, 4>}]} {
    %c0 = arith.constant 0 : index
    %c0_0 = arith.constant 0 : index
    %0 = vector.load %arg1[%c0, %c0_0] : memref<8x32xf32, #tpu.memory_space<vmem>>, vector<8x32xf32>
    %c0_1 = arith.constant 0 : index
    %c0_2 = arith.constant 0 : index
    %1 = vector.load %arg2[%c0_1, %c0_2] : memref<32x64xf32, #tpu.memory_space<vmem>>, vector<32x64xf32>
    %cst = arith.constant dense<0.000000e+00> : vector<8x64xf32>
    %2 = tpu.matmul %0, %1, %cst {dimension_numbers = #tpu.dot_dimension_numbers<[1], [0], [0], [1], [0, 0, 1, 1], [], []>} : vector<8x32xf32>, vector<32x64xf32>, vector<8x64xf32> -> vector<8x64xf32>
    %c0_3 = arith.constant 0 : index
    %c0_4 = arith.constant 0 : index
    %3 = vector.load %arg3[%c0_3, %c0_4] : memref<1x64xf32, #tpu.memory_space<vmem>>, vector<1x64xf32>
    %4 = vector.broadcast %3 : vector<1x64xf32> to vector<8x64xf32>
    %5 = arith.addf %2, %4 : vector<8x64xf32>
    %cst_5 = arith.constant 0.000000e+00 : f32
    %6 = vector.broadcast %cst_5 : f32 to vector<8x64xf32>
    %7 = arith.maximumf %5, %6 : vector<8x64xf32>
    %c0_6 = arith.constant 0 : index
    %c0_7 = arith.constant 0 : index
    %8 = vector.load %arg4[%c0_6, %c0_7] : memref<64x4xf32, #tpu.memory_space<vmem>>, vector<64x4xf32>
    %cst_8 = arith.constant dense<0.000000e+00> : vector<8x4xf32>
    %9 = tpu.matmul %7, %8, %cst_8 {dimension_numbers = #tpu.dot_dimension_numbers<[1], [0], [0], [1], [0, 0, 1, 1], [], []>} : vector<8x64xf32>, vector<64x4xf32>, vector<8x4xf32> -> vector<8x4xf32>
    %c0_9 = arith.constant 0 : index
    %c0_10 = arith.constant 0 : index
    %10 = vector.load %arg5[%c0_9, %c0_10] : memref<1x4xf32, #tpu.memory_space<vmem>>, vector<1x4xf32>
    %11 = vector.broadcast %10 : vector<1x4xf32> to vector<8x4xf32>
    %12 = arith.addf %9, %11 : vector<8x4xf32>
    %c0_11 = arith.constant 0 : index
    %c0_12 = arith.constant 0 : index
    %13 = vector.load %arg6[%c0_11, %c0_12] : memref<8x4xf32, #tpu.memory_space<vmem>>, vector<8x4xf32>
    tpu.vector_store %arg6[%c0_11, %c0_12], %12 {strides = array<i32>} : memref<8x4xf32, #tpu.memory_space<vmem>>, vector<8x4xf32>,
    return
  }
  func.func @transform_0(%arg0: i32) -> (i32, i32) {
    %c0_i32 = arith.constant 0 : i32
    %c0_i32_0 = arith.constant 0 : i32
    return %arg0, %c0_i32 : i32, i32
  }
  func.func @transform_1(%arg0: i32) -> (i32, i32) {
    %c0_i32 = arith.constant 0 : i32
    %c0_i32_0 = arith.constant 0 : i32
    %c0_i32_1 = arith.constant 0 : i32
    return %c0_i32, %c0_i32_0 : i32, i32
  }
  func.func @transform_2(%arg0: i32) -> (i32, i32) {
    %c0_i32 = arith.constant 0 : i32
    %c0_i32_0 = arith.constant 0 : i32
    %c0_i32_1 = arith.constant 0 : i32
    return %c0_i32, %c0_i32_0 : i32, i32
  }
  func.func @transform_3(%arg0: i32) -> (i32, i32) {
    %c0_i32 = arith.constant 0 : i32
    %c0_i32_0 = arith.constant 0 : i32
    %c0_i32_1 = arith.constant 0 : i32
    return %c0_i32, %c0_i32_0 : i32, i32
  }
  func.func @transform_4(%arg0: i32) -> (i32, i32) {
    %c0_i32 = arith.constant 0 : i32
    %c0_i32_0 = arith.constant 0 : i32
    %c0_i32_1 = arith.constant 0 : i32
    return %c0_i32, %c0_i32_0 : i32, i32
  }
  func.func @transform_5(%arg0: i32) -> (i32, i32) {
    %c0_i32 = arith.constant 0 : i32
    %c0_i32_0 = arith.constant 0 : i32
    return %arg0, %c0_i32 : i32, i32
  }
}

</mosaic_0001>

<llo_original>
// kernel: tpu_custom_call.1
$region0: #{tpu_custom_call.1}
  #allocation0 [shape = 'u32[]', space=smem, size = 0x4, offset = 0x4, fixed_abs, tag = 'smem constant byte address 0x4 - core index']
  #allocation1 [shape = 'u32[144,128]{1,0:T(1,128)}', space=vmem, size = 0x12000, scoped, tag = 'internal scratch']
  %s0 = inlined_call_operand.vmem [shape: f32[16,32], index: 0, kind: input, shape index: {}]
  %s1 = inlined_call_operand.vmem [shape: f32[32,64], index: 1, kind: input, shape index: {}]
  %s2 = inlined_call_operand.vmem [shape: f32[1,64], index: 2, kind: input, shape index: {}]
  %s3 = inlined_call_operand.vmem [shape: f32[64,4], index: 3, kind: input, shape index: {}]
  %s4 = inlined_call_operand.vmem [shape: f32[1,4], index: 4, kind: input, shape index: {}]
  %s5 = inlined_call_operand.vmem [shape: f32[16,4], index: 5, kind: output, shape index: {}]
  %s6 = sld [smem:[#allocation0]]
  $region53: #{tpu_custom_call.1} parent=0
    _
  %s8 = ssub.s32 1, %s6
  %s9 = scalar_select 0, %s8, %s6
  loop: start=0, step=1, limit=4
  $region2: #{tpu_custom_call.1} parent=0 // loop_pre_header
    _
  $region3: #{tpu_custom_call.1} parent=0 // loop_header
    %s11 = sphi 0, %s15
    %p12 = scmp.ge.s32.totalorder %s11, 4
    %s21 = sphi 0, %s23
    %s24 = sphi 0, %s21
    %s25 = sphi 0, %s24
    %s41 = sphi 0, %s25
    %s45 = sphi 0, %s45
    %s47 = sphi 0, %s45
    %s48 = sphi 0, %s47
    %s62 = sphi 0, %s48
    %s66 = sphi 0, %s66
    %s68 = sphi 0, %s66
    %s69 = sphi 0, %s68
    %s83 = sphi 0, %s69
    %s87 = sphi 0, %s87
    %s89 = sphi 0, %s87
    %s90 = sphi 0, %s89
    %s104 = sphi 0, %s90
    %s108 = sphi 0, %s108
    %s110 = sphi 0, %s108
    %s111 = sphi 0, %s110
    %s125 = sphi 0, %s111
    %s131 = sphi 0, %s133
    %s134 = sphi 0, %s131
    %s135 = sphi 0, %s134
    %s151 = sphi 0, %s135
  $region4: #{tpu_custom_call.1} parent=0 // loop_header_branch
    %14 = sbr.rel (%p12) target = $region8
  $region5: #{tpu_custom_call.1} parent=0 // loop_body
    %s16 = ssub.s32 %s11, 1
    %s17 = ssub.s32 %s11, 2
    %s18 = sadd.s32 %s11, 1
    %s19 = ssub.s32 %s11, %s18
    %p20 = scmp.eq.s32.totalorder %s19, 0
    %s22 = sadd.s32 %s21, 1
    %s23 = scalar_select %p20, %s21, %s22
    %p26 = pneg %p20
    %p27 = scmp.eq.s32.totalorder %s11, 1
    %p28 = por %p26, %p27
    %p29 = scmp.ne.s32.totalorder %s21, %s24
    %p30 = scmp.eq.s32.totalorder %s11, 0
    %p31 = por %p29, %p30
    %p32 = scmp.ne.s32.totalorder %s21, %s24
    %p33 = scmp.eq.s32.totalorder %s16, 1
    %p34 = por %p32, %p33
    %p35 = scmp.ne.s32.totalorder %s24, %s25
    %p36 = scmp.eq.s32.totalorder %s16, 0
    %p37 = por %p35, %p36
    %p38 = scmp.ne.s32.totalorder %s24, %s25
    %p39 = scmp.eq.s32.totalorder %s17, 1
    %p40 = por %p38, %p39
    %p42 = scmp.ne.s32.totalorder %s25, %s41
    %p43 = scmp.eq.s32.totalorder %s17, 0
    %p44 = por %p42, %p43
    %s46 = sadd.s32 %s45, 1
    %p49 = scmp.eq.s32.totalorder %s11, 1
    %p50 = scmp.ne.s32.totalorder %s45, %s47
    %p51 = scmp.eq.s32.totalorder %s11, 0
    %p52 = por %p50, %p51
    %p53 = scmp.ne.s32.totalorder %s45, %s47
    %p54 = scmp.eq.s32.totalorder %s16, 1
    %p55 = por %p53, %p54
    %p56 = scmp.ne.s32.totalorder %s47, %s48
    %p57 = scmp.eq.s32.totalorder %s16, 0
    %p58 = por %p56, %p57
    %p59 = scmp.ne.s32.totalorder %s47, %s48
    %p60 = scmp.eq.s32.totalorder %s17, 1
    %p61 = por %p59, %p60
    %p63 = scmp.ne.s32.totalorder %s48, %s62
    %p64 = scmp.eq.s32.totalorder %s17, 0
    %p65 = por %p63, %p64
    %s67 = sadd.s32 %s66, 1
    %p70 = scmp.eq.s32.totalorder %s11, 1
    %p71 = scmp.ne.s32.totalorder %s66, %s68
    %p72 = scmp.eq.s32.totalorder %s11, 0
    %p73 = por %p71, %p72
    %p74 = scmp.ne.s32.totalorder %s66, %s68
    %p75 = scmp.eq.s32.totalorder %s16, 1
    %p76 = por %p74, %p75
    %p77 = scmp.ne.s32.totalorder %s68, %s69
    %p78 = scmp.eq.s32.totalorder %s16, 0
    %p79 = por %p77, %p78
    %p80 = scmp.ne.s32.totalorder %s68, %s69
    %p81 = scmp.eq.s32.totalorder %s17, 1
    %p82 = por %p80, %p81
    %p84 = scmp.ne.s32.totalorder %s69, %s83
    %p85 = scmp.eq.s32.totalorder %s17, 0
    %p86 = por %p84, %p85
    %s88 = sadd.s32 %s87, 1
    %p91 = scmp.eq.s32.totalorder %s11, 1
    %p92 = scmp.ne.s32.totalorder %s87, %s89
    %p93 = scmp.eq.s32.totalorder %s11, 0
    %p94 = por %p92, %p93
    %p95 = scmp.ne.s32.totalorder %s87, %s89
    %p96 = scmp.eq.s32.totalorder %s16, 1
    %p97 = por %p95, %p96
    %p98 = scmp.ne.s32.totalorder %s89, %s90
    %p99 = scmp.eq.s32.totalorder %s16, 0
    %p100 = por %p98, %p99
    %p101 = scmp.ne.s32.totalorder %s89, %s90
    %p102 = scmp.eq.s32.totalorder %s17, 1
    %p103 = por %p101, %p102
    %p105 = scmp.ne.s32.totalorder %s90, %s104
    %p106 = scmp.eq.s32.totalorder %s17, 0
    %p107 = por %p105, %p106
    %s109 = sadd.s32 %s108, 1
    %p112 = scmp.eq.s32.totalorder %s11, 1
    %p113 = scmp.ne.s32.totalorder %s108, %s110
    %p114 = scmp.eq.s32.totalorder %s11, 0
    %p115 = por %p113, %p114
    %p116 = scmp.ne.s32.totalorder %s108, %s110
    %p117 = scmp.eq.s32.totalorder %s16, 1
    %p118 = por %p116, %p117
    %p119 = scmp.ne.s32.totalorder %s110, %s111
    %p120 = scmp.eq.s32.totalorder %s16, 0
    %p121 = por %p119, %p120
    %p122 = scmp.ne.s32.totalorder %s110, %s111
    %p123 = scmp.eq.s32.totalorder %s17, 1
    %p124 = por %p122, %p123
    %p126 = scmp.ne.s32.totalorder %s111, %s125
    %p127 = scmp.eq.s32.totalorder %s17, 0
    %p128 = por %p126, %p127
    %s129 = ssub.s32 %s11, %s18
    %p130 = scmp.eq.s32.totalorder %s129, 0
    %s132 = sadd.s32 %s131, 1
    %s133 = scalar_select %p130, %s131, %s132
    %p136 = pneg %p130
    %p137 = scmp.eq.s32.totalorder %s11, 1
    %p138 = por %p136, %p137
    %p139 = scmp.ne.s32.totalorder %s131, %s134
    %p140 = scmp.eq.s32.totalorder %s11, 0
    %p141 = por %p139, %p140
    %p142 = scmp.ne.s32.totalorder %s131, %s134
    %p143 = scmp.eq.s32.totalorder %s16, 1
    %p144 = por %p142, %p143
    %p145 = scmp.ne.s32.totalorder %s134, %s135
    %p146 = scmp.eq.s32.totalorder %s16, 0
    %p147 = por %p145, %p146
    %p148 = scmp.ne.s32.totalorder %s134, %s135
    %p149 = scmp.eq.s32.totalorder %s17, 1
    %p150 = por %p148, %p149
    %p152 = scmp.ne.s32.totalorder %s135, %s151
    %p153 = scmp.eq.s32.totalorder %s17, 0
    %p154 = por %p152, %p153
    %p155 = scmp.le.s32.totalorder 1, %s11
    %p156 = scmp.lt.s32.totalorder %s11, 3
    %p157 = pnand %p155, %p156
    %p158 = pneg %p157
    // Predicated region
    $region9: #{tpu_custom_call.1} parent=5 // pred_check
      _
    $region10: #{tpu_custom_call.1} parent=5 // pred_check_branch
      %160 = sbr.rel (%p157) target = $region12
    $region11: #{tpu_custom_call.1} parent=5 // pred_region
      %s161 = ssub.s32 %s11, 1
      // Predicated region
      $region13: #{tpu_custom_call.1} parent=11 // pred_check
        %p162 = pneg %p58
      $region14: #{tpu_custom_call.1} parent=11 // pred_check_branch
        %164 = sbr.rel (%p162) target = $region16
      $region15: #{tpu_custom_call.1} parent=11 // pred_region
        _
      $region16: #{tpu_custom_call.1} parent=11 // pred_fallthru
        _
      // Predicated region
      $region17: #{tpu_custom_call.1} parent=11 // pred_check
        %p165 = pneg %p79
      $region18: #{tpu_custom_call.1} parent=11 // pred_check_branch
        %167 = sbr.rel (%p165) target = $region20
      $region19: #{tpu_custom_call.1} parent=11 // pred_region
        _
      $region20: #{tpu_custom_call.1} parent=11 // pred_fallthru
        _
      // Predicated region
      $region21: #{tpu_custom_call.1} parent=11 // pred_check
        %p168 = pneg %p100
      $region22: #{tpu_custom_call.1} parent=11 // pred_check_branch
        %170 = sbr.rel (%p168) target = $region24
      $region23: #{tpu_custom_call.1} parent=11 // pred_region
        _
      $region24: #{tpu_custom_call.1} parent=11 // pred_fallthru
        _
      // Predicated region
      $region25: #{tpu_custom_call.1} parent=11 // pred_check
        %p171 = pneg %p121
      $region26: #{tpu_custom_call.1} parent=11 // pred_check_branch
        %173 = sbr.rel (%p171) target = $region28
      $region27: #{tpu_custom_call.1} parent=11 // pred_region
        _
      $region28: #{tpu_custom_call.1} parent=11 // pred_fallthru
        _
    $region12: #{tpu_custom_call.1} parent=5 // pred_fallthru
      _
    %p174 = scmp.lt.s32.totalorder %s11, 2
    // Predicated region
    $region29: #{tpu_custom_call.1} parent=5 // pred_check
      %p175 = pneg %p174
    $region30: #{tpu_custom_call.1} parent=5 // pred_check_branch
      %177 = sbr.rel (%p175) target = $region32
    $region31: #{tpu_custom_call.1} parent=5 // pred_region
      // Predicated region
      $region33: #{tpu_custom_call.1} parent=31 // pred_check
        %p178 = pneg %p31
      $region34: #{tpu_custom_call.1} parent=31 // pred_check_branch
        %180 = sbr.rel (%p178) target = $region36
      $region35: #{tpu_custom_call.1} parent=31 // pred_region
        %p181 = scmp.lt.s32.totalorder %s11, 1
        %s182 = scalar_select %p181, %s11, 1
        %s183 = smul.addr %s182, 8
        %s184 = scalar_lea.vmem %s0, %s183
      $region36: #{tpu_custom_call.1} parent=31 // pred_fallthru
        _
    $region32: #{tpu_custom_call.1} parent=5 // pred_fallthru
      _
    %p185 = scmp.le.s32.totalorder 1, %s11
    %p186 = scmp.lt.s32.totalorder %s11, 3
    %p187 = pnand %p185, %p186
    %p188 = pneg %p187
    // Predicated region
    $region37: #{tpu_custom_call.1} parent=5 // pred_check
      _
    $region38: #{tpu_custom_call.1} parent=5 // pred_check_branch
      %190 = sbr.rel (%p187) target = $region40
    $region39: #{tpu_custom_call.1} parent=5 // pred_region
      %s191 = ssub.s32 %s11, 1
      %p192 = scmp.lt.s32.totalorder %s16, 1
      %s193 = scalar_select %p192, %s16, 1
      %s194 = smul.addr %s193, 8
      %s195 = scalar_lea.vmem %s0, %s194
      %p196 = pneg %p37
      %p197 = pneg %p34
      %p198 = pneg %p58
      %p199 = pneg %p55
      %p200 = pneg %p79
      %p201 = pneg %p76
      %p202 = pneg %p100
      %p203 = pneg %p97
      %p204 = pneg %p121
      %p205 = pneg %p118
      %p206 = pneg %p147
      %p207 = pneg %p144
      %p208 = scmp.lt.s32.totalorder %s16, 1
      %s209 = scalar_select %p208, %s16, 1
      %s210 = smul.addr %s209, 8
      %s211 = scalar_lea.vmem %s5, %s210
      %p212 = scmp.lt.s32.totalorder %s16, 1
      %s213 = scalar_select %p212, %s16, 1
      %s214 = smul.addr %s213, 8
      %s215 = scalar_lea.vmem %s0, %s214
      %p216 = scmp.lt.s32.totalorder %s16, 1
      %s217 = scalar_select %p216, %s16, 1
      %s218 = smul.addr %s217, 8
      %s219 = scalar_lea.vmem %s5, %s218
      %v220 = vld [vmem:[%s215] sm:$0xff]
      %v221 = vld [vmem:[%s1] sm:$0xff]
      %v222 = vld [vmem:[%s1 + $0x8] sm:$0xff]
      %v223 = vld [vmem:[%s1 + $0x10] sm:$0xff]
      %v224 = vld [vmem:[%s1 + $0x18] sm:$0xff]
      %v225 = vld [vmem:[%s2] sm:$0x1]
      %v227 = vlaneseq
      %v228 = vshrl.u32 %v227, 7
      %v229 = vsub.s32 0, %v228
      %v230 = vrot.slane %v225, %v229
      %vm232 = vcmask 261120
      %v234 = vsel %vm232, %v220, 0
      %236 = vmatprep.subr.mxu0 0.0
      %237 = vmatpush1.msra.mxu0 0.0
      %238 = vmatprep.subr.mxu0 0.0
      %239 = vmatpush1.msra.mxu0 0.0
      %240 = vmatprep.subr.mxu0 0.0
      %241 = vmatpush1.msra.mxu0 0.0
      %242 = vmatprep.subr.mxu0 0.0
      %243 = vmatpush1.msra.mxu0 0.0
      %244 = vmatprep.subr.mxu0 0.0
      %245 = vmatpush1.msra.mxu0 0.0
      %246 = vmatprep.subr.mxu0 0.0
      %247 = vmatpush1.msra.mxu0 0.0
      %248 = vmatprep.subr.mxu0 0.0
      %249 = vmatpush1.msra.mxu0 0.0
      %250 = vmatprep.subr.mxu0 0.0
      %251 = vmatpush1.msra.mxu0 0.0
      %252 = vmatprep.subr.mxu0 0.0
      %253 = vmatpush1.msra.mxu0 0.0
      %254 = vmatprep.subr.mxu0 0.0
      %255 = vmatpush1.msra.mxu0 0.0
      %256 = vmatprep.subr.mxu0 0.0
      %257 = vmatpush1.msra.mxu0 0.0
      %258 = vmatprep.subr.mxu0 0.0
      %259 = vmatpush1.msra.mxu0 0.0
      %260 = vmatprep.subr.mxu0 0.0
      %261 = vmatpush1.msra.mxu0 %v224
      %262 = vmatprep.subr.mxu0 0.0
      %263 = vmatpush1.msra.mxu0 %v223
      %264 = vmatprep.subr.mxu0 0.0
      %265 = vmatpush1.msra.mxu0 %v222
      %266 = vmatprep.subr.mxu0 0.0
      %267 = vmatpush1.msra.mxu0 %v221
      %268 = vmatprep.subr.mxu0 0.0
      %269 = vmatpush2.msra.mxu0 0.0
      %270 = vmatprep.subr.mxu0 0.0
      %271 = vmatpush2.msra.mxu0 0.0
      %272 = vmatprep.subr.mxu0 0.0
      %273 = vmatpush2.msra.mxu0 0.0
      %274 = vmatprep.subr.mxu0 0.0
      %275 = vmatpush2.msra.mxu0 0.0
      %276 = vmatprep.subr.mxu0 0.0
      %277 = vmatpush2.msra.mxu0 0.0
      %278 = vmatprep.subr.mxu0 0.0
      %279 = vmatpush2.msra.mxu0 0.0
      %280 = vmatprep.subr.mxu0 0.0
      %281 = vmatpush2.msra.mxu0 0.0
      %282 = vmatprep.subr.mxu0 0.0
      %283 = vmatpush2.msra.mxu0 0.0
      %284 = vmatprep.subr.mxu0 0.0
      %285 = vmatpush2.msra.mxu0 0.0
      %286 = vmatprep.subr.mxu0 0.0
      %287 = vmatpush2.msra.mxu0 0.0
      %288 = vmatprep.subr.mxu0 0.0
      %289 = vmatpush2.msra.mxu0 0.0
      %290 = vmatprep.subr.mxu0 0.0
      %291 = vmatpush2.msra.mxu0 0.0
      %292 = vmatprep.subr.mxu0 0.0
      %293 = vmatpush2.msra.mxu0 0.0
      %294 = vmatprep.subr.mxu0 0.0
      %295 = vmatpush2.msra.mxu0 0.0
      %296 = vmatprep.subr.mxu0 0.0
      %297 = vmatpush2.msra.mxu0 0.0
      %298 = vmatprep.subr.mxu0 0.0
      %299 = vmatpush2.msra.mxu0 0.0
      %300 = vmatprep.mubr.f32.mxu0 0.0
      %301 = vmatmul.mubr.f32.gmra.mxu0 %v234
      %v302 = vpop.f32.mrf.mxu0
      %v303 = vadd.f32 %v230, %v302
      %v304 = vpop.f32.mrf.mxu0
      %305 = vdwg.mxu0
      %v306 = vmax.f32 %v303, 0.0
      %v307 = vld [vmem:[%s3] sm:$0xff]
      %v308 = vld [vmem:[%s3 + $0x8] sm:$0xff]
      %v309 = vld [vmem:[%s3 + $0x10] sm:$0xff]
      %v310 = vld [vmem:[%s3 + $0x18] sm:$0xff]
      %v311 = vld [vmem:[%s3 + $0x20] sm:$0xff]
      %v312 = vld [vmem:[%s3 + $0x28] sm:$0xff]
      %v313 = vld [vmem:[%s3 + $0x30] sm:$0xff]
      %v314 = vld [vmem:[%s3 + $0x38] sm:$0xff]
      %v315 = vld [vmem:[%s4] sm:$0x1]
      %v317 = vlaneseq
      %v318 = vshrl.u32 %v317, 7
      %v319 = vsub.s32 0, %v318
      %v320 = vrot.slane %v315, %v319
      %vm322 = vcmask 523264
      %v324 = vsel %vm322, %v306, 0
      %326 = vmatprep.subr.mxu0 0.0
      %327 = vmatpush1.msra.mxu0 0.0
      %328 = vmatprep.subr.mxu0 0.0
      %329 = vmatpush1.msra.mxu0 0.0
      %330 = vmatprep.subr.mxu0 0.0
      %331 = vmatpush1.msra.mxu0 0.0
      %332 = vmatprep.subr.mxu0 0.0
      %333 = vmatpush1.msra.mxu0 0.0
      %334 = vmatprep.subr.mxu0 0.0
      %335 = vmatpush1.msra.mxu0 0.0
      %336 = vmatprep.subr.mxu0 0.0
      %337 = vmatpush1.msra.mxu0 0.0
      %338 = vmatprep.subr.mxu0 0.0
      %339 = vmatpush1.msra.mxu0 0.0
      %340 = vmatprep.subr.mxu0 0.0
      %341 = vmatpush1.msra.mxu0 0.0
      %342 = vmatprep.subr.mxu0 0.0
      %343 = vmatpush1.msra.mxu0 %v314
      %344 = vmatprep.subr.mxu0 0.0
      %345 = vmatpush1.msra.mxu0 %v313
      %346 = vmatprep.subr.mxu0 0.0
      %347 = vmatpush1.msra.mxu0 %v312
      %348 = vmatprep.subr.mxu0 0.0
      %349 = vmatpush1.msra.mxu0 %v311
      %350 = vmatprep.subr.mxu0 0.0
      %351 = vmatpush1.msra.mxu0 %v310
      %352 = vmatprep.subr.mxu0 0.0
      %353 = vmatpush1.msra.mxu0 %v309
      %354 = vmatprep.subr.mxu0 0.0
      %355 = vmatpush1.msra.mxu0 %v308
      %356 = vmatprep.subr.mxu0 0.0
      %357 = vmatpush1.msra.mxu0 %v307
      %358 = vmatprep.subr.mxu0 0.0
      %359 = vmatpush2.msra.mxu0 0.0
      %360 = vmatprep.subr.mxu0 0.0
      %361 = vmatpush2.msra.mxu0 0.0
      %362 = vmatprep.subr.mxu0 0.0
      %363 = vmatpush2.msra.mxu0 0.0
      %364 = vmatprep.subr.mxu0 0.0
      %365 = vmatpush2.msra.mxu0 0.0
      %366 = vmatprep.subr.mxu0 0.0
      %367 = vmatpush2.msra.mxu0 0.0
      %368 = vmatprep.subr.mxu0 0.0
      %369 = vmatpush2.msra.mxu0 0.0
      %370 = vmatprep.subr.mxu0 0.0
      %371 = vmatpush2.msra.mxu0 0.0
      %372 = vmatprep.subr.mxu0 0.0
      %373 = vmatpush2.msra.mxu0 0.0
      %374 = vmatprep.subr.mxu0 0.0
      %375 = vmatpush2.msra.mxu0 0.0
      %376 = vmatprep.subr.mxu0 0.0
      %377 = vmatpush2.msra.mxu0 0.0
      %378 = vmatprep.subr.mxu0 0.0
      %379 = vmatpush2.msra.mxu0 0.0
      %380 = vmatprep.subr.mxu0 0.0
      %381 = vmatpush2.msra.mxu0 0.0
      %382 = vmatprep.subr.mxu0 0.0
      %383 = vmatpush2.msra.mxu0 0.0
      %384 = vmatprep.subr.mxu0 0.0
      %385 = vmatpush2.msra.mxu0 0.0
      %386 = vmatprep.subr.mxu0 0.0
      %387 = vmatpush2.msra.mxu0 0.0
      %388 = vmatprep.subr.mxu0 0.0
      %389 = vmatpush2.msra.mxu0 0.0
      %390 = vmatprep.mubr.f32.mxu0 0.0
      %391 = vmatmul.mubr.f32.gmra.mxu0 %v324
      %v392 = vpop.f32.mrf.mxu0
      %v393 = vadd.f32 %v320, %v392
      %v394 = vpop.f32.mrf.mxu0
      %395 = vdwg.mxu0
      %vm396 = vcmask 31744
      %397 = vst.msk [vmem:[%s219] sm:$0xff] %vm396, %v393
      %p398 = scmp.lt.s32.totalorder %s16, 1
      %s399 = scalar_select %p398, %s16, 1
      %s400 = smul.addr %s399, 8
      %s401 = scalar_lea.vmem %s5, %s400
      // Predicated region
      $region41: #{tpu_custom_call.1} parent=39 // pred_check
        %p402 = pneg %p144
      $region42: #{tpu_custom_call.1} parent=39 // pred_check_branch
        %404 = sbr.rel (%p402) target = $region44
      $region43: #{tpu_custom_call.1} parent=39 // pred_region
        _
      $region44: #{tpu_custom_call.1} parent=39 // pred_fallthru
        _
    $region40: #{tpu_custom_call.1} parent=5 // pred_fallthru
      _
    %p405 = scmp.le.s32.totalorder 2, %s11
    // Predicated region
    $region45: #{tpu_custom_call.1} parent=5 // pred_check
      %p406 = pneg %p405
    $region46: #{tpu_custom_call.1} parent=5 // pred_check_branch
      %408 = sbr.rel (%p406) target = $region48
    $region47: #{tpu_custom_call.1} parent=5 // pred_region
      %s409 = ssub.s32 %s11, 2
      // Predicated region
      $region49: #{tpu_custom_call.1} parent=47 // pred_check
        %p410 = pneg %p150
      $region50: #{tpu_custom_call.1} parent=47 // pred_check_branch
        %412 = sbr.rel (%p410) target = $region52
      $region51: #{tpu_custom_call.1} parent=47 // pred_region
        %p413 = scmp.lt.s32.totalorder %s17, 1
        %s414 = scalar_select %p413, %s17, 1
        %s415 = smul.addr %s414, 8
        %s416 = scalar_lea.vmem %s5, %s415
      $region52: #{tpu_custom_call.1} parent=47 // pred_fallthru
        _
    $region48: #{tpu_custom_call.1} parent=5 // pred_fallthru
      _
  $region6: #{tpu_custom_call.1} parent=0 // loop_footer
    %s15 = sadd.s32 1, %s11
  $region7: #{tpu_custom_call.1} parent=0 // loop_footer_branch
    %10 = sbr.rel target = $region3
  $region8: #{tpu_custom_call.1} parent=0 // loop_exit
    _

</llo_original>
